<compile_context>
chip_gen: v6e
topology: v6e:2x2x1
jax: 0.10.0
libtpu: 0.0.40
codegen_flags: <defaults>
</compile_context>

<pallas_src>
import functools

import jax
import jax.numpy as jnp
from jax.experimental import pallas as pl
from jax.experimental.pallas import tpu as pltpu


def mlp_kernel(x_ref,
               w1_ref, t1_ref,
               w2_ref, t2_ref,
               w3_ref, t3_ref,
               w4_ref, b4_ref,
               o_ref):
    # layer_1 + folded batchnorm1 + relu
    h = jnp.dot(x_ref[...], w1_ref[...], preferred_element_type=jnp.float32)
    h = jnp.maximum(h + t1_ref[...], 0.0)

    # layer_2 + folded batchnorm2 + relu (+ dropout p=0.2, identity in eval)
    # TODO(synk): training-mode dropout (p=0.2) not implemented; eval mode is identity.
    h = jnp.dot(h.astype(jnp.bfloat16), w2_ref[...], preferred_element_type=jnp.float32)
    h = jnp.maximum(h + t2_ref[...], 0.0)

    # layer_3 + folded batchnorm3 + relu (+ dropout p=0.2, identity in eval)
    h = jnp.dot(h.astype(jnp.bfloat16), w3_ref[...], preferred_element_type=jnp.float32)
    h = jnp.maximum(h + t3_ref[...], 0.0)

    # layer_out (bias only, padded to 128 lanes)
    o = jnp.dot(h.astype(jnp.bfloat16), w4_ref[...], preferred_element_type=jnp.float32)
    o_ref[...] = o + b4_ref[...]


def _fold_linear_bn(w, b, gamma, beta, mean, var, eps=1e-5):
    """Fold Linear bias + eval BatchNorm into (bf16 weight, f32 shift)."""
    scale = gamma / jnp.sqrt(var + eps)
    w_folded = (w * scale[None, :]).astype(jnp.bfloat16)
    shift = (b * scale + beta - mean * scale).reshape(1, -1).astype(jnp.float32)
    return w_folded, shift


def _round_up(n, m):
    return ((n + m - 1) // m) * m


def multiclass_classification_forward(x, params):
    B, F = x.shape
    C = params["w4"].shape[1]

    # --- host-side parameter prep (fold BN, cast to bf16, pad class dim) ---
    w1, t1 = _fold_linear_bn(params["w1"], params["b1"], params["bn1_g"],
                             params["bn1_b"], params["bn1_m"], params["bn1_v"])
    w2, t2 = _fold_linear_bn(params["w2"], params["b2"], params["bn2_g"],
                             params["bn2_b"], params["bn2_m"], params["bn2_v"])
    w3, t3 = _fold_linear_bn(params["w3"], params["b3"], params["bn3_g"],
                             params["bn3_b"], params["bn3_m"], params["bn3_v"])

    C_pad = max(128, _round_up(C, 128))
    w4 = jnp.zeros((params["w4"].shape[0], C_pad), jnp.float32)
    w4 = w4.at[:, :C].set(params["w4"]).astype(jnp.bfloat16)
    b4 = jnp.zeros((1, C_pad), jnp.float32).at[0, :C].set(params["b4"])

    # --- batch tiling: TB multiple of 8 (f32/bf16 sublane), up to 512 rows ---
    TB = min(512, _round_up(B, 8))
    B_pad = _round_up(B, TB)
    x_bf16 = x.astype(jnp.bfloat16)
    if B_pad != B:
        x_bf16 = jnp.zeros((B_pad, F), jnp.bfloat16).at[:B, :].set(x_bf16)

    grid = (pl.cdiv(B_pad, TB),)
    const = lambda i: (0, 0)          # weights / shifts stay VMEM-resident
    row_tile = lambda i: (i, 0)       # x / out tiled over the batch axis

    weight_args = (w1, t1, w2, t2, w3, t3, w4, b4)
    in_specs = [pl.BlockSpec((TB, F), row_tile)] + [
        pl.BlockSpec(a.shape, const) for a in weight_args
    ]
    out_specs = pl.BlockSpec((TB, C_pad), row_tile)

    flops = 2 * B_pad * (F * 512 + 512 * 128 + 128 * 64 + 64 * C_pad)
    bytes_accessed = (
        x_bf16.size * 2
        + sum(int(a.size) * a.dtype.itemsize for a in weight_args)
        + B_pad * C_pad * 4
    )

    out = pl.pallas_call(
        mlp_kernel,
        out_shape=jax.ShapeDtypeStruct((B_pad, C_pad), jnp.float32),
        grid=grid,
        in_specs=in_specs,
        out_specs=out_specs,
        compiler_params=pltpu.CompilerParams(
            dimension_semantics=("parallel",),
            vmem_limit_bytes=32 * 1024 * 1024,
        ),
        cost_estimate=pl.CostEstimate(
            flops=flops, transcendentals=0, bytes_accessed=bytes_accessed
        ),
    )(x_bf16, *weight_args)

    return out[:B, :C]


def init_params(key, num_feature, num_class):
    """Deterministic init mimicking PyTorch shapes; weights stored pre-transposed (in, out)."""
    def linear(key, fan_in, fan_out):
        kw, kb = jax.random.split(key)
        bound = 1.0 / jnp.sqrt(fan_in)
        w = jax.random.uniform(kw, (fan_in, fan_out), jnp.float32, -bound, bound)
        b = jax.random.uniform(kb, (fan_out,), jnp.float32, -bound, bound)
        return w, b

    def bn(key, n):
        kg, kb, km, kv = jax.random.split(key, 4)
        gamma = 1.0 + 0.1 * jax.random.normal(kg, (n,), jnp.float32)
        beta = 0.1 * jax.random.normal(kb, (n,), jnp.float32)
        mean = 0.1 * jax.random.normal(km, (n,), jnp.float32)
        var = jnp.abs(1.0 + 0.1 * jax.random.normal(kv, (n,), jnp.float32))
        return gamma, beta, mean, var

    keys = jax.random.split(key, 7)
    w1, b1 = linear(keys[0], num_feature, 512)
    w2, b2 = linear(keys[1], 512, 128)
    w3, b3 = linear(keys[2], 128, 64)
    w4, b4 = linear(keys[3], 64, num_class)
    g1, be1, m1, v1 = bn(keys[4], 512)
    g2, be2, m2, v2 = bn(keys[5], 128)
    g3, be3, m3, v3 = bn(keys[6], 64)

    return dict(
        w1=w1, b1=b1, w2=w2, b2=b2, w3=w3, b3=b3, w4=w4, b4=b4,
        bn1_g=g1, bn1_b=be1, bn1_m=m1, bn1_v=v1,
        bn2_g=g2, bn2_b=be2, bn2_m=m2, bn2_v=v2,
        bn3_g=g3, bn3_b=be3, bn3_m=m3, bn3_v=v3,
    )


def reference_forward(x, params):
    """Pure-JAX f32 reference (matches the PyTorch module in eval mode)."""
    def bn_relu(h, g, b, m, v, eps=1e-5):
        return jnp.maximum(g * (h - m) / jnp.sqrt(v + eps) + b, 0.0)

    h = x @ params["w1"] + params["b1"]
    h = bn_relu(h, params["bn1_g"], params["bn1_b"], params["bn1_m"], params["bn1_v"])
    h = h @ params["w2"] + params["b2"]
    h = bn_relu(h, params["bn2_g"], params["bn2_b"], params["bn2_m"], params["bn2_v"])
    h = h @ params["w3"] + params["b3"]
    h = bn_relu(h, params["bn3_g"], params["bn3_b"], params["bn3_m"], params["bn3_v"])
    return h @ params["w4"] + params["b4"]


if __name__ == "__main__":
    num_feature, num_class, batch = 32, 8, 8
    key = jax.random.PRNGKey(0)
    kx, kp = jax.random.split(key)
    x = jax.random.normal(kx, (batch, num_feature), jnp.float32)
    params = init_params(kp, num_feature, num_class)

    out = multiclass_classification_forward(x, params)
    out = jax.block_until_ready(out)

    ref = reference_forward(x, params)
    assert out.shape == (batch, num_class)
    # Looser tolerance: MXU inputs are bf16 (f32 accumulation); reference is pure f32.
    assert jnp.allclose(out, ref, atol=5e-2, rtol=5e-2), "mismatch vs reference"
    print("KERNEL_OK")
</pallas_src>

<mosaic_0001>
module attributes {stable_mosaic.version = 11 : i64} {
  func.func @mlp_kernel(%arg0: i32, %arg1: memref<8x32xbf16, #tpu.memory_space<vmem>>, %arg2: memref<32x512xbf16, #tpu.memory_space<vmem>>, %arg3: memref<1x512xf32, #tpu.memory_space<vmem>>, %arg4: memref<512x128xbf16, #tpu.memory_space<vmem>>, %arg5: memref<1x128xf32, #tpu.memory_space<vmem>>, %arg6: memref<128x64xbf16, #tpu.memory_space<vmem>>, %arg7: memref<1x64xf32, #tpu.memory_space<vmem>>, %arg8: memref<64x128xbf16, #tpu.memory_space<vmem>>, %arg9: memref<1x128xf32, #tpu.memory_space<vmem>>, %arg10: memref<8x128xf32, #tpu.memory_space<vmem>>) attributes {dimension_semantics = [#tpu.dimension_semantics<parallel>], iteration_bounds = array<i64: 1>, scalar_prefetch = 0 : i64, scratch_operands = 0 : i64, tpu.core_type = #tpu.core_type<tc>, window_params = [{transform_indices = @transform_0, window_bounds = array<i64: 8, 32>}, {pipeline_mode = #tpu.pipeline_mode<synchronous>, transform_indices = @transform_1, window_bounds = array<i64: 32, 512>}, {pipeline_mode = #tpu.pipeline_mode<synchronous>, transform_indices = @transform_2, window_bounds = array<i64: 1, 512>}, {pipeline_mode = #tpu.pipeline_mode<synchronous>, transform_indices = @transform_3, window_bounds = array<i64: 512, 128>}, {pipeline_mode = #tpu.pipeline_mode<synchronous>, transform_indices = @transform_4, window_bounds = array<i64: 1, 128>}, {pipeline_mode = #tpu.pipeline_mode<synchronous>, transform_indices = @transform_5, window_bounds = array<i64: 128, 64>}, {pipeline_mode = #tpu.pipeline_mode<synchronous>, transform_indices = @transform_6, window_bounds = array<i64: 1, 64>}, {pipeline_mode = #tpu.pipeline_mode<synchronous>, transform_indices = @transform_7, window_bounds = array<i64: 64, 128>}, {pipeline_mode = #tpu.pipeline_mode<synchronous>, transform_indices = @transform_8, window_bounds = array<i64: 1, 128>}, {transform_indices = @transform_9, window_bounds = array<i64: 8, 128>}]} {
    %c0 = arith.constant 0 : index
    %c0_0 = arith.constant 0 : index
    %0 = vector.load %arg1[%c0, %c0_0] : memref<8x32xbf16, #tpu.memory_space<vmem>>, vector<8x32xbf16>
    %c0_1 = arith.constant 0 : index
    %c0_2 = arith.constant 0 : index
    %1 = vector.load %arg2[%c0_1, %c0_2] : memref<32x512xbf16, #tpu.memory_space<vmem>>, vector<32x512xbf16>
    %cst = arith.constant dense<0.000000e+00> : vector<8x512xf32>
    %2 = tpu.matmul %0, %1, %cst {dimension_numbers = #tpu.dot_dimension_numbers<[1], [0], [0], [1], [0, 0, 1, 1], [], []>} : vector<8x32xbf16>, vector<32x512xbf16>, vector<8x512xf32> -> vector<8x512xf32>
    %c0_3 = arith.constant 0 : index
    %c0_4 = arith.constant 0 : index
    %3 = vector.load %arg3[%c0_3, %c0_4] : memref<1x512xf32, #tpu.memory_space<vmem>>, vector<1x512xf32>
    %4 = vector.broadcast %3 : vector<1x512xf32> to vector<8x512xf32>
    %5 = arith.addf %2, %4 : vector<8x512xf32>
    %cst_5 = arith.constant 0.000000e+00 : f32
    %6 = vector.broadcast %cst_5 : f32 to vector<8x512xf32>
    %7 = arith.maximumf %5, %6 : vector<8x512xf32>
    %8 = arith.truncf %7 : vector<8x512xf32> to vector<8x512xbf16>
    %c0_6 = arith.constant 0 : index
    %c0_7 = arith.constant 0 : index
    %9 = vector.load %arg4[%c0_6, %c0_7] : memref<512x128xbf16, #tpu.memory_space<vmem>>, vector<512x128xbf16>
    %cst_8 = arith.constant dense<0.000000e+00> : vector<8x128xf32>
    %10 = tpu.matmul %8, %9, %cst_8 {dimension_numbers = #tpu.dot_dimension_numbers<[1], [0], [0], [1], [0, 0, 1, 1], [], []>} : vector<8x512xbf16>, vector<512x128xbf16>, vector<8x128xf32> -> vector<8x128xf32>
    %c0_9 = arith.constant 0 : index
    %c0_10 = arith.constant 0 : index
    %11 = vector.load %arg5[%c0_9, %c0_10] : memref<1x128xf32, #tpu.memory_space<vmem>>, vector<1x128xf32>
    %12 = vector.broadcast %11 : vector<1x128xf32> to vector<8x128xf32>
    %13 = arith.addf %10, %12 : vector<8x128xf32>
    %cst_11 = arith.constant 0.000000e+00 : f32
    %14 = vector.broadcast %cst_11 : f32 to vector<8x128xf32>
    %15 = arith.maximumf %13, %14 : vector<8x128xf32>
    %16 = arith.truncf %15 : vector<8x128xf32> to vector<8x128xbf16>
    %c0_12 = arith.constant 0 : index
    %c0_13 = arith.constant 0 : index
    %17 = vector.load %arg6[%c0_12, %c0_13] : memref<128x64xbf16, #tpu.memory_space<vmem>>, vector<128x64xbf16>
    %cst_14 = arith.constant dense<0.000000e+00> : vector<8x64xf32>
    %18 = tpu.matmul %16, %17, %cst_14 {dimension_numbers = #tpu.dot_dimension_numbers<[1], [0], [0], [1], [0, 0, 1, 1], [], []>} : vector<8x128xbf16>, vector<128x64xbf16>, vector<8x64xf32> -> vector<8x64xf32>
    %c0_15 = arith.constant 0 : index
    %c0_16 = arith.constant 0 : index
    %19 = vector.load %arg7[%c0_15, %c0_16] : memref<1x64xf32, #tpu.memory_space<vmem>>, vector<1x64xf32>
    %20 = vector.broadcast %19 : vector<1x64xf32> to vector<8x64xf32>
    %21 = arith.addf %18, %20 : vector<8x64xf32>
    %cst_17 = arith.constant 0.000000e+00 : f32
    %22 = vector.broadcast %cst_17 : f32 to vector<8x64xf32>
    %23 = arith.maximumf %21, %22 : vector<8x64xf32>
    %24 = arith.truncf %23 : vector<8x64xf32> to vector<8x64xbf16>
    %c0_18 = arith.constant 0 : index
    %c0_19 = arith.constant 0 : index
    %25 = vector.load %arg8[%c0_18, %c0_19] : memref<64x128xbf16, #tpu.memory_space<vmem>>, vector<64x128xbf16>
    %cst_20 = arith.constant dense<0.000000e+00> : vector<8x128xf32>
    %26 = tpu.matmul %24, %25, %cst_20 {dimension_numbers = #tpu.dot_dimension_numbers<[1], [0], [0], [1], [0, 0, 1, 1], [], []>} : vector<8x64xbf16>, vector<64x128xbf16>, vector<8x128xf32> -> vector<8x128xf32>
    %c0_21 = arith.constant 0 : index
    %c0_22 = arith.constant 0 : index
    %27 = vector.load %arg9[%c0_21, %c0_22] : memref<1x128xf32, #tpu.memory_space<vmem>>, vector<1x128xf32>
    %28 = vector.broadcast %27 : vector<1x128xf32> to vector<8x128xf32>
    %29 = arith.addf %26, %28 : vector<8x128xf32>
    %c0_23 = arith.constant 0 : index
    %c0_24 = arith.constant 0 : index
    %30 = vector.load %arg10[%c0_23, %c0_24] : memref<8x128xf32, #tpu.memory_space<vmem>>, vector<8x128xf32>
    tpu.vector_store %arg10[%c0_23, %c0_24], %29 {strides = array<i32>} : memref<8x128xf32, #tpu.memory_space<vmem>>, vector<8x128xf32>,
    return
  }
  func.func @transform_0(%arg0: i32) -> (i32, i32) {
    %c0_i32 = arith.constant 0 : i32
    %c0_i32_0 = arith.constant 0 : i32
    return %arg0, %c0_i32 : i32, i32
  }
  func.func @transform_1(%arg0: i32) -> (i32, i32) {
    %c0_i32 = arith.constant 0 : i32
    %c0_i32_0 = arith.constant 0 : i32
    %c0_i32_1 = arith.constant 0 : i32
    return %c0_i32, %c0_i32_0 : i32, i32
  }
  func.func @transform_2(%arg0: i32) -> (i32, i32) {
    %c0_i32 = arith.constant 0 : i32
    %c0_i32_0 = arith.constant 0 : i32
    %c0_i32_1 = arith.constant 0 : i32
    return %c0_i32, %c0_i32_0 : i32, i32
  }
  func.func @transform_3(%arg0: i32) -> (i32, i32) {
    %c0_i32 = arith.constant 0 : i32
    %c0_i32_0 = arith.constant 0 : i32
    %c0_i32_1 = arith.constant 0 : i32
    return %c0_i32, %c0_i32_0 : i32, i32
  }
  func.func @transform_4(%arg0: i32) -> (i32, i32) {
    %c0_i32 = arith.constant 0 : i32
    %c0_i32_0 = arith.constant 0 : i32
    %c0_i32_1 = arith.constant 0 : i32
    return %c0_i32, %c0_i32_0 : i32, i32
  }
  func.func @transform_5(%arg0: i32) -> (i32, i32) {
    %c0_i32 = arith.constant 0 : i32
    %c0_i32_0 = arith.constant 0 : i32
    %c0_i32_1 = arith.constant 0 : i32
    return %c0_i32, %c0_i32_0 : i32, i32
  }
  func.func @transform_6(%arg0: i32) -> (i32, i32) {
    %c0_i32 = arith.constant 0 : i32
    %c0_i32_0 = arith.constant 0 : i32
    %c0_i32_1 = arith.constant 0 : i32
    return %c0_i32, %c0_i32_0 : i32, i32
  }
  func.func @transform_7(%arg0: i32) -> (i32, i32) {
    %c0_i32 = arith.constant 0 : i32
    %c0_i32_0 = arith.constant 0 : i32
    %c0_i32_1 = arith.constant 0 : i32
    return %c0_i32, %c0_i32_0 : i32, i32
  }
  func.func @transform_8(%arg0: i32) -> (i32, i32) {
    %c0_i32 = arith.constant 0 : i32
    %c0_i32_0 = arith.constant 0 : i32
    %c0_i32_1 = arith.constant 0 : i32
    return %c0_i32, %c0_i32_0 : i32, i32
  }
  func.func @transform_9(%arg0: i32) -> (i32, i32) {
    %c0_i32 = arith.constant 0 : i32
    %c0_i32_0 = arith.constant 0 : i32
    return %arg0, %c0_i32 : i32, i32
  }
}

</mosaic_0001>

<llo_original>
// kernel: tpu_custom_call.1
$region0: #{tpu_custom_call.1}
  #allocation0 [shape = 'u32[]', space=smem, size = 0x4, offset = 0x4, fixed_abs, tag = 'smem constant byte address 0x4 - core index']
  #allocation1 [shape = 'u32[144,128]{1,0:T(1,128)}', space=vmem, size = 0x12000, scoped, tag = 'internal scratch']
  %s0 = inlined_call_operand.hbm [shape: bf16[8,32], index: 0, kind: input, shape index: {}]
  %s1 = inlined_call_operand.vmem [shape: bf16[32,512], index: 1, kind: input, shape index: {}]
  %s2 = inlined_call_operand.hbm [shape: f32[1,512], index: 2, kind: input, shape index: {}]
  %s3 = inlined_call_operand.hbm [shape: bf16[512,128], index: 3, kind: input, shape index: {}]
  %s4 = inlined_call_operand.vmem [shape: f32[1,128], index: 4, kind: input, shape index: {}]
  %s5 = inlined_call_operand.vmem [shape: bf16[128,64], index: 5, kind: input, shape index: {}]
  %s6 = inlined_call_operand.vmem [shape: f32[1,64], index: 6, kind: input, shape index: {}]
  %s7 = inlined_call_operand.vmem [shape: bf16[64,128], index: 7, kind: input, shape index: {}]
  %s8 = inlined_call_operand.vmem [shape: f32[1,128], index: 8, kind: input, shape index: {}]
  %s9 = inlined_call_operand.hbm [shape: f32[8,128], index: 9, kind: output, shape index: {}]
  %s10 = sld [smem:[#allocation0]]
  $region58: #{tpu_custom_call.1} parent=0
    _
  %s12 = ssub.s32 1, %s10
  %s13 = scalar_select 0, %s12, %s10
  $region1: #{tpu_custom_call.1} parent=0
    #allocation2 [shape = 'u8[2048]{0}', space=vmem, size = 0x800, scoped, tag = 'input window, operand 0, single buffered']
    #allocation3 [shape = 's32[1]{0}', space=sflag, size = 0x4, scoped, tag = 'scoped memory for tpu_custom_call.1']
    #allocation4 [shape = 's32[1]{0}', space=sflag, size = 0x4, scoped, tag = 'scoped memory for tpu_custom_call.1']
    #allocation5 [shape = 'u8[2048]{0}', space=vmem, size = 0x800, scoped, tag = 'input window, operand 2, single buffered']
    #allocation6 [shape = 's32[1]{0}', space=sflag, size = 0x4, scoped, tag = 'scoped memory for tpu_custom_call.1']
    #allocation7 [shape = 'u8[131072]{0}', space=vmem, size = 0x20000, scoped, tag = 'input window, operand 3, single buffered']
    #allocation8 [shape = 'u8[4096]{0}', space=vmem, size = 0x1000, scoped, tag = 'output window, operand 0, single buffered']
    %14 = vsyncpa [#allocation3], 0
    %15 = vsyncpa [#allocation6], 0
    %16 = vsyncpa [#allocation4], 0
    // Predicated region
    $region2: #{tpu_custom_call.1} parent=1 // pred_check
      _
    $region3: #{tpu_custom_call.1} parent=1 // pred_check_branch
      %18 = sbr.rel (0) target = $region5
    $region4: #{tpu_custom_call.1} parent=1 // pred_region
      %s20 = ssub.s32 64, 64
      %21 = vsyncadd [#allocation3], %s20
      %s23 = sshll.u32 [#allocation2], 4
      %s24 = int_to_ptr.vmem [resolvable:$true] %s23
      %26 = dma.hbm_to_vmem [thread:$0]  %s0, 64, %s24, [#allocation3]
    $region5: #{tpu_custom_call.1} parent=1 // pred_fallthru
      _
    // Predicated region
    $region6: #{tpu_custom_call.1} parent=1 // pred_check
      _
    $region7: #{tpu_custom_call.1} parent=1 // pred_check_branch
      %28 = sbr.rel (0) target = $region9
    $region8: #{tpu_custom_call.1} parent=1 // pred_region
      _
    $region9: #{tpu_custom_call.1} parent=1 // pred_fallthru
      _
    // Predicated region
    $region10: #{tpu_custom_call.1} parent=1 // pred_check
      _
    $region11: #{tpu_custom_call.1} parent=1 // pred_check_branch
      %30 = sbr.rel (0) target = $region13
    $region12: #{tpu_custom_call.1} parent=1 // pred_region
      %s32 = ssub.s32 64, 64
      %33 = vsyncadd [#allocation6], %s32
      %s35 = sshll.u32 [#allocation5], 4
      %s36 = int_to_ptr.vmem [resolvable:$true] %s35
      %38 = dma.hbm_to_vmem [thread:$0]  %s2, 64, %s36, [#allocation6]
    $region13: #{tpu_custom_call.1} parent=1 // pred_fallthru
      _
    // Predicated region
    $region14: #{tpu_custom_call.1} parent=1 // pred_check
      _
    $region15: #{tpu_custom_call.1} parent=1 // pred_check_branch
      %40 = sbr.rel (0) target = $region17
    $region16: #{tpu_custom_call.1} parent=1 // pred_region
      %s42 = ssub.s32 4096, 4096
      %43 = vsyncadd [#allocation6], %s42
      %s44 = sshll.u32 [#allocation7], 4
      %s45 = int_to_ptr.vmem [resolvable:$true] %s44
      %50 = dma.hbm_to_vmem [thread:$0]  %s3, 4096, %s45, [#allocation6], 64, 64, 4
    $region17: #{tpu_custom_call.1} parent=1 // pred_fallthru
      _
    // Predicated region
    $region18: #{tpu_custom_call.1} parent=1 // pred_check
      _
    $region19: #{tpu_custom_call.1} parent=1 // pred_check_branch
      %52 = sbr.rel (0) target = $region21
    $region20: #{tpu_custom_call.1} parent=1 // pred_region
      _
    $region21: #{tpu_custom_call.1} parent=1 // pred_fallthru
      _
    // Predicated region
    $region22: #{tpu_custom_call.1} parent=1 // pred_check
      _
    $region23: #{tpu_custom_call.1} parent=1 // pred_check_branch
      %54 = sbr.rel (0) target = $region25
    $region24: #{tpu_custom_call.1} parent=1 // pred_region
      _
    $region25: #{tpu_custom_call.1} parent=1 // pred_fallthru
      _
    // Predicated region
    $region26: #{tpu_custom_call.1} parent=1 // pred_check
      _
    $region27: #{tpu_custom_call.1} parent=1 // pred_check_branch
      %56 = sbr.rel (0) target = $region29
    $region28: #{tpu_custom_call.1} parent=1 // pred_region
      _
    $region29: #{tpu_custom_call.1} parent=1 // pred_fallthru
      _
    // Predicated region
    $region30: #{tpu_custom_call.1} parent=1 // pred_check
      _
    $region31: #{tpu_custom_call.1} parent=1 // pred_check_branch
      %58 = sbr.rel (0) target = $region33
    $region32: #{tpu_custom_call.1} parent=1 // pred_region
      _
    $region33: #{tpu_custom_call.1} parent=1 // pred_fallthru
      _
    // Predicated region
    $region34: #{tpu_custom_call.1} parent=1 // pred_check
      _
    $region35: #{tpu_custom_call.1} parent=1 // pred_check_branch
      %60 = sbr.rel (0) target = $region37
    $region36: #{tpu_custom_call.1} parent=1 // pred_region
      _
    $region37: #{tpu_custom_call.1} parent=1 // pred_fallthru
      _
    // Predicated region
    $region38: #{tpu_custom_call.1} parent=1 // pred_check
      _
    $region39: #{tpu_custom_call.1} parent=1 // pred_check_branch
      %62 = sbr.rel (0) target = $region41
    $region40: #{tpu_custom_call.1} parent=1 // pred_region
      %63 = dma.done [#allocation3], 64
    $region41: #{tpu_custom_call.1} parent=1 // pred_fallthru
      _
    // Predicated region
    $region42: #{tpu_custom_call.1} parent=1 // pred_check
      _
    $region43: #{tpu_custom_call.1} parent=1 // pred_check_branch
      %65 = sbr.rel (0) target = $region45
    $region44: #{tpu_custom_call.1} parent=1 // pred_region
      %66 = dma.done [#allocation6], 64
    $region45: #{tpu_custom_call.1} parent=1 // pred_fallthru
      _
    // Predicated region
    $region46: #{tpu_custom_call.1} parent=1 // pred_check
      _
    $region47: #{tpu_custom_call.1} parent=1 // pred_check_branch
      %68 = sbr.rel (0) target = $region49
    $region48: #{tpu_custom_call.1} parent=1 // pred_region
      %69 = dma.done [#allocation6], 4096
    $region49: #{tpu_custom_call.1} parent=1 // pred_fallthru
      _
    %v71 = vld [vmem:[#allocation2] sm:$0xf]
    %v72 = vld [vmem:[%s1] sm:$0xff]
    %v73 = vld [vmem:[%s1 + $0x8] sm:$0xff]
    %v74 = vld [vmem:[%s1 + $0x10] sm:$0xff]
    %v75 = vld [vmem:[%s1 + $0x18] sm:$0xff]
    %v76 = vld [vmem:[%s1 + $0x20] sm:$0xff]
    %v77 = vld [vmem:[%s1 + $0x28] sm:$0xff]
    %v78 = vld [vmem:[%s1 + $0x30] sm:$0xff]
    %v79 = vld [vmem:[%s1 + $0x38] sm:$0xff]
    %v80 = vld [vmem:[#allocation5] sm:$0xf]
    %v82 = vlaneseq
    %v83 = vshrl.u32 %v82, 7
    %v84 = vsub.s32 0, %v83
    %v85 = vrot.slane %v80, %v84
    %v86 = vlaneseq
    %v87 = vshrl.u32 %v86, 7
    %v88 = vsub.s32 1, %v87
    %v89 = vrot.slane %v80, %v88
    %v90 = vlaneseq
    %v91 = vshrl.u32 %v90, 7
    %v92 = vsub.s32 2, %v91
    %v93 = vrot.slane %v80, %v92
    %v94 = vlaneseq
    %v95 = vshrl.u32 %v94, 7
    %v96 = vsub.s32 3, %v95
    %v97 = vrot.slane %v80, %v96
    %v110 = vunpack.c.l.b16 %v72
    %v111 = vunpack.c.h.b16 %v72
    %v112 = vunpack.c.l.b16 %v73
    %v113 = vunpack.c.h.b16 %v73
    %v114 = vunpack.c.l.b16 %v74
    %v115 = vunpack.c.h.b16 %v74
    %v116 = vunpack.c.l.b16 %v75
    %v117 = vunpack.c.h.b16 %v75
    %v118 = vunpack.c.l.b16 %v76
    %v119 = vunpack.c.h.b16 %v76
    %v120 = vunpack.c.l.b16 %v77
    %v121 = vunpack.c.h.b16 %v77
    %v122 = vunpack.c.l.b16 %v78
    %v123 = vunpack.c.h.b16 %v78
    %v124 = vunpack.c.l.b16 %v79
    %v125 = vunpack.c.h.b16 %v79
    %v126 = vpack.c.b16 %v114, %v110
    %v127 = vpack.c.b16 %v115, %v111
    %v128 = vpack.c.b16 %v116, %v112
    %v129 = vpack.c.b16 %v117, %v113
    %v130 = vpack.c.b16 %v122, %v118
    %v131 = vpack.c.b16 %v123, %v119
    %v132 = vpack.c.b16 %v124, %v120
    %v133 = vpack.c.b16 %v125, %v121
    %vm142 = vcmask 261120
    %v144 = vsel %vm142, %v71, 0
    %146 = vmatprep.subr.bf16.mxu0 0
    %147 = vmatpush1.bf16.msra.mxu0 0
    %148 = vmatprep.subr.bf16.mxu0 0
    %149 = vmatpush1.bf16.msra.mxu0 0
    %150 = vmatprep.subr.bf16.mxu0 0
    %151 = vmatpush1.bf16.msra.mxu0 0
    %152 = vmatprep.subr.bf16.mxu0 0
    %153 = vmatpush1.bf16.msra.mxu0 0
    %154 = vmatprep.subr.bf16.mxu0 0
    %155 = vmatpush1.bf16.msra.mxu0 0
    %156 = vmatprep.subr.bf16.mxu0 0
    %157 = vmatpush1.bf16.msra.mxu0 0
    %158 = vmatprep.subr.bf16.mxu0 %v131
    %159 = vmatpush1.bf16.msra.mxu0 %v130
    %160 = vmatprep.subr.bf16.mxu0 %v127
    %161 = vmatpush1.bf16.msra.mxu0 %v126
    %162 = vmatprep.subr.bf16.mxu0 0
    %163 = vmatpush2.bf16.msra.mxu0 0
    %164 = vmatprep.subr.bf16.mxu0 0
    %165 = vmatpush2.bf16.msra.mxu0 0
    %166 = vmatprep.subr.bf16.mxu0 0
    %167 = vmatpush2.bf16.msra.mxu0 0
    %168 = vmatprep.subr.bf16.mxu0 0
    %169 = vmatpush2.bf16.msra.mxu0 0
    %170 = vmatprep.subr.bf16.mxu0 0
    %171 = vmatpush2.bf16.msra.mxu0 0
    %172 = vmatprep.subr.bf16.mxu0 0
    %173 = vmatpush2.bf16.msra.mxu0 0
    %174 = vmatprep.subr.bf16.mxu0 0
    %175 = vmatpush2.bf16.msra.mxu0 0
    %176 = vmatprep.subr.bf16.mxu0 0
    %177 = vmatpush2.bf16.msra.mxu0 0
    %178 = vmatprep.mubr.bf16.mxu0 0
    %179 = vmatmul.mubr.bf16.gmra.mxu0 %v144
    %v180 = vpop.f32.mrf.mxu0
    %v181 = vadd.f32 %v85, %v180
    %v182 = vpop.f32.mrf.mxu0
    %v183 = vadd.f32 %v89, %v182
    %v184 = vpop.f32.mrf.mxu0
    %v185 = vpop.f32.mrf.mxu0
    %186 = vdwg.mxu0
    %187 = vmatprep.subr.bf16.mxu0 0
    %188 = vmatpush1.bf16.msra.mxu0 0
    %189 = vmatprep.subr.bf16.mxu0 0
    %190 = vmatpush1.bf16.msra.mxu0 0
    %191 = vmatprep.subr.bf16.mxu0 0
    %192 = vmatpush1.bf16.msra.mxu0 0
    %193 = vmatprep.subr.bf16.mxu0 0
    %194 = vmatpush1.bf16.msra.mxu0 0
    %195 = vmatprep.subr.bf16.mxu0 0
    %196 = vmatpush1.bf16.msra.mxu0 0
    %197 = vmatprep.subr.bf16.mxu0 0
    %198 = vmatpush1.bf16.msra.mxu0 0
    %199 = vmatprep.subr.bf16.mxu0 %v133
    %200 = vmatpush1.bf16.msra.mxu0 %v132
    %201 = vmatprep.subr.bf16.mxu0 %v129
    %202 = vmatpush1.bf16.msra.mxu0 %v128
    %203 = vmatprep.subr.bf16.mxu0 0
    %204 = vmatpush2.bf16.msra.mxu0 0
    %205 = vmatprep.subr.bf16.mxu0 0
    %206 = vmatpush2.bf16.msra.mxu0 0
    %207 = vmatprep.subr.bf16.mxu0 0
    %208 = vmatpush2.bf16.msra.mxu0 0
    %209 = vmatprep.subr.bf16.mxu0 0
    %210 = vmatpush2.bf16.msra.mxu0 0
    %211 = vmatprep.subr.bf16.mxu0 0
    %212 = vmatpush2.bf16.msra.mxu0 0
    %213 = vmatprep.subr.bf16.mxu0 0
    %214 = vmatpush2.bf16.msra.mxu0 0
    %215 = vmatprep.subr.bf16.mxu0 0
    %216 = vmatpush2.bf16.msra.mxu0 0
    %217 = vmatprep.subr.bf16.mxu0 0
    %218 = vmatpush2.bf16.msra.mxu0 0
    %219 = vmatprep.mubr.bf16.mxu0 0
    %220 = vmatmul.mubr.bf16.gmra.mxu0 %v144
    %v221 = vpop.f32.mrf.mxu0
    %v222 = vadd.f32 %v93, %v221
    %v223 = vpop.f32.mrf.mxu0
    %v224 = vadd.f32 %v97, %v223
    %v225 = vpop.f32.mrf.mxu0
    %v226 = vpop.f32.mrf.mxu0
    %227 = vdwg.mxu0
    %v228 = vmax.f32 %v181, 0.0
    %v229 = vmax.f32 %v183, 0.0
    %v230 = vmax.f32 %v222, 0.0
    %v231 = vmax.f32 %v224, 0.0
    %v232 = vpack.c.bf16 %v228, %v228
    %v233 = vpack.c.bf16 %v229, %v229
    %v234 = vpack.c.bf16 %v230, %v230
    %v235 = vpack.c.bf16 %v231, %v231
    %v236 = vld [vmem:[#allocation7] sm:$0xf]
    %v237 = vld [vmem:[#allocation7 + $0x4] sm:$0xf]
    %v238 = vld [vmem:[#allocation7 + $0x8] sm:$0xf]
    %v239 = vld [vmem:[#allocation7 + $0xc] sm:$0xf]
    %v240 = vld [vmem:[#allocation7 + $0x10] sm:$0xf]
    %v241 = vld [vmem:[#allocation7 + $0x14] sm:$0xf]
    %v242 = vld [vmem:[#allocation7 + $0x18] sm:$0xf]
    %v243 = vld [vmem:[#allocation7 + $0x1c] sm:$0xf]
    %v244 = vld [vmem:[#allocation7 + $0x20] sm:$0xf]
    %v245 = vld [vmem:[#allocation7 + $0x24] sm:$0xf]
    %v246 = vld [vmem:[#allocation7 + $0x28] sm:$0xf]
    %v247 = vld [vmem:[#allocation7 + $0x2c] sm:$0xf]
    %v248 = vld [vmem:[#allocation7 + $0x30] sm:$0xf]
    %v249 = vld [vmem:[#allocation7 + $0x34] sm:$0xf]
    %v250 = vld [vmem:[#allocation7 + $0x38] sm:$0xf]
    %v251 = vld [vmem:[#allocation7 + $0x3c] sm:$0xf]
    %v252 = vld [vmem:[#allocation7 + $0x40] sm:$0xf]
    %v253 = vld [vmem:[#allocation7 + $0x44] sm:$0xf]
    %v254 = vld [vmem:[#allocation7 + $0x48] sm:$0xf]
    %v255 = vld [vmem:[#allocation7 + $0x4c] sm:$0xf]
    %v256 = vld [vmem:[#allocation7 + $0x50] sm:$0xf]
    %v257 = vld [vmem:[#allocation7 + $0x54] sm:$0xf]
    %v258 = vld [vmem:[#allocation7 + $0x58] sm:$0xf]
    %v259 = vld [vmem:[#allocation7 + $0x5c] sm:$0xf]
    %v260 = vld [vmem:[#allocation7 + $0x60] sm:$0xf]
    %v261 = vld [vmem:[#allocation7 + $0x64] sm:$0xf]
    %v262 = vld [vmem:[#allocation7 + $0x68] sm:$0xf]
    %v263 = vld [vmem:[#allocation7 + $0x6c] sm:$0xf]
    %v264 = vld [vmem:[#allocation7 + $0x70] sm:$0xf]
    %v265 = vld [vmem:[#allocation7 + $0x74] sm:$0xf]
    %v266 = vld [vmem:[#allocation7 + $0x78] sm:$0xf]
    %v267 = vld [vmem:[#allocation7 + $0x7c] sm:$0xf]
    %v268 = vld [vmem:[#allocation7 + $0x80] sm:$0xf]
    %v269 = vld [vmem:[#allocation7 + $0x84] sm:$0xf]
    %v270 = vld [vmem:[#allocation7 + $0x88] sm:$0xf]
    %v271 = vld [vmem:[#allocation7 + $0x8c] sm:$0xf]
    %v272 = vld [vmem:[#allocation7 + $0x90] sm:$0xf]
    %v273 = vld [vmem:[#allocation7 + $0x94] sm:$0xf]
    %v274 = vld [vmem:[#allocation7 + $0x98] sm:$0xf]
    %v275 = vld [vmem:[#allocation7 + $0x9c] sm:$0xf]
    %v276 = vld [vmem:[#allocation7 + $0xa0] sm:$0xf]
    %v277 = vld [vmem:[#allocation7 + $0xa4] sm:$0xf]
    %v278 = vld [vmem:[#allocation7 + $0xa8] sm:$0xf]
    %v279 = vld [vmem:[#allocation7 + $0xac] sm:$0xf]
    %v280 = vld [vmem:[#allocation7 + $0xb0] sm:$0xf]
    %v281 = vld [vmem:[#allocation7 + $0xb4] sm:$0xf]
    %v282 = vld [vmem:[#allocation7 + $0xb8] sm:$0xf]
    %v283 = vld [vmem:[#allocation7 + $0xbc] sm:$0xf]
    %v284 = vld [vmem:[#allocation7 + $0xc0] sm:$0xf]
    %v285 = vld [vmem:[#allocation7 + $0xc4] sm:$0xf]
    %v286 = vld [vmem:[#allocation7 + $0xc8] sm:$0xf]
    %v287 = vld [vmem:[#allocation7 + $0xcc] sm:$0xf]
    %v288 = vld [vmem:[#allocation7 + $0xd0] sm:$0xf]
    %v289 = vld [vmem:[#allocation7 + $0xd4] sm:$0xf]
    %v290 = vld [vmem:[#allocation7 + $0xd8] sm:$0xf]
    %v291 = vld [vmem:[#allocation7 + $0xdc] sm:$0xf]
    %v292 = vld [vmem:[#allocation7 + $0xe0] sm:$0xf]
    %v293 = vld [vmem:[#allocation7 + $0xe4] sm:$0xf]
    %v294 = vld [vmem:[#allocation7 + $0xe8] sm:$0xf]
    %v295 = vld [vmem:[#allocation7 + $0xec] sm:$0xf]
    %v296 = vld [vmem:[#allocation7 + $0xf0] sm:$0xf]
    %v297 = vld [vmem:[#allocation7 + $0xf4] sm:$0xf]
    %v298 = vld [vmem:[#allocation7 + $0xf8] sm:$0xf]
    %v299 = vld [vmem:[#allocation7 + $0xfc] sm:$0xf]
    %v300 = vld [vmem:[%s4] sm:$0x1]
    %v302 = vlaneseq
    %v303 = vshrl.u32 %v302, 7
    %v304 = vsub.s32 0, %v303
    %v305 = vrot.slane %v300, %v304
    %v371 = vunpack.c.l.b16 %v236
    %v372 = vunpack.c.l.b16 %v237
    %v373 = vunpack.c.l.b16 %v238
    %v374 = vunpack.c.l.b16 %v239
    %v375 = vunpack.c.l.b16 %v240
    %v376 = vunpack.c.l.b16 %v241
    %v377 = vunpack.c.l.b16 %v242
    %v378 = vunpack.c.l.b16 %v243
    %v379 = vunpack.c.l.b16 %v244
    %v380 = vunpack.c.l.b16 %v245
    %v381 = vunpack.c.l.b16 %v246
    %v382 = vunpack.c.l.b16 %v247
    %v383 = vunpack.c.l.b16 %v248
    %v384 = vunpack.c.l.b16 %v249
    %v385 = vunpack.c.l.b16 %v250
    %v386 = vunpack.c.l.b16 %v251
    %v387 = vunpack.c.l.b16 %v252
    %v388 = vunpack.c.l.b16 %v253
    %v389 = vunpack.c.l.b16 %v254
    %v390 = vunpack.c.l.b16 %v255
    %v391 = vunpack.c.l.b16 %v256
    %v392 = vunpack.c.l.b16 %v257
    %v393 = vunpack.c.l.b16 %v258
    %v394 = vunpack.c.l.b16 %v259
    %v395 = vunpack.c.l.b16 %v260
    %v396 = vunpack.c.l.b16 %v261
    %v397 = vunpack.c.l.b16 %v262
    %v398 = vunpack.c.l.b16 %v263
    %v399 = vunpack.c.l.b16 %v264
    %v400 = vunpack.c.l.b16 %v265
    %v401 = vunpack.c.l.b16 %v266
    %v402 = vunpack.c.l.b16 %v267
    %v403 = vunpack.c.l.b16 %v268
    %v404 = vunpack.c.l.b16 %v269
    %v405 = vunpack.c.l.b16 %v270
    %v406 = vunpack.c.l.b16 %v271
    %v407 = vunpack.c.l.b16 %v272
    %v408 = vunpack.c.l.b16 %v273
    %v409 = vunpack.c.l.b16 %v274
    %v410 = vunpack.c.l.b16 %v275
    %v411 = vunpack.c.l.b16 %v276
    %v412 = vunpack.c.l.b16 %v277
    %v413 = vunpack.c.l.b16 %v278
    %v414 = vunpack.c.l.b16 %v279
    %v415 = vunpack.c.l.b16 %v280
    %v416 = vunpack.c.l.b16 %v281
    %v417 = vunpack.c.l.b16 %v282
    %v418 = vunpack.c.l.b16 %v283
    %v419 = vunpack.c.l.b16 %v284
    %v420 = vunpack.c.l.b16 %v285
    %v421 = vunpack.c.l.b16 %v286
    %v422 = vunpack.c.l.b16 %v287
    %v423 = vunpack.c.l.b16 %v288
    %v424 = vunpack.c.l.b16 %v289
    %v425 = vunpack.c.l.b16 %v290
    %v426 = vunpack.c.l.b16 %v291
    %v427 = vunpack.c.l.b16 %v292
    %v428 = vunpack.c.l.b16 %v293
    %v429 = vunpack.c.l.b16 %v294
    %v430 = vunpack.c.l.b16 %v295
    %v431 = vunpack.c.l.b16 %v296
    %v432 = vunpack.c.l.b16 %v297
    %v433 = vunpack.c.l.b16 %v298
    %v434 = vunpack.c.l.b16 %v299
    %v435 = vpack.c.b16 %v372, %v371
    %v436 = vpack.c.b16 %v374, %v373
    %v437 = vpack.c.b16 %v376, %v375
    %v438 = vpack.c.b16 %v378, %v377
    %v439 = vpack.c.b16 %v380, %v379
    %v440 = vpack.c.b16 %v382, %v381
    %v441 = vpack.c.b16 %v384, %v383
    %v442 = vpack.c.b16 %v386, %v385
    %v443 = vpack.c.b16 %v388, %v387
    %v444 = vpack.c.b16 %v390, %v389
    %v445 = vpack.c.b16 %v392, %v391
    %v446 = vpack.c.b16 %v394, %v393
    %v447 = vpack.c.b16 %v396, %v395
    %v448 = vpack.c.b16 %v398, %v397
    %v449 = vpack.c.b16 %v400, %v399
    %v450 = vpack.c.b16 %v402, %v401
    %v451 = vpack.c.b16 %v404, %v403
    %v452 = vpack.c.b16 %v406, %v405
    %v453 = vpack.c.b16 %v408, %v407
    %v454 = vpack.c.b16 %v410, %v409
    %v455 = vpack.c.b16 %v412, %v411
    %v456 = vpack.c.b16 %v414, %v413
    %v457 = vpack.c.b16 %v416, %v415
    %v458 = vpack.c.b16 %v418, %v417
    %v459 = vpack.c.b16 %v420, %v419
    %v460 = vpack.c.b16 %v422, %v421
    %v461 = vpack.c.b16 %v424, %v423
    %v462 = vpack.c.b16 %v426, %v425
    %v463 = vpack.c.b16 %v428, %v427
    %v464 = vpack.c.b16 %v430, %v429
    %v465 = vpack.c.b16 %v432, %v431
    %v466 = vpack.c.b16 %v434, %v433
    %499 = vmatprep.subr.bf16.mxu0 0
    %500 = vmatpush1.bf16.msra.mxu0 %v442
    %501 = vmatprep.subr.bf16.mxu0 0
    %502 = vmatpush1.bf16.msra.mxu0 %v441
    %503 = vmatprep.subr.bf16.mxu0 0
    %504 = vmatpush1.bf16.msra.mxu0 %v440
    %505 = vmatprep.subr.bf16.mxu0 0
    %506 = vmatpush1.bf16.msra.mxu0 %v439
    %507 = vmatprep.subr.bf16.mxu0 0
    %508 = vmatpush1.bf16.msra.mxu0 %v438
    %509 = vmatprep.subr.bf16.mxu0 0
    %510 = vmatpush1.bf16.msra.mxu0 %v437
    %511 = vmatprep.subr.bf16.mxu0 0
    %512 = vmatpush1.bf16.msra.mxu0 %v436
    %513 = vmatprep.subr.bf16.mxu0 0
    %514 = vmatpush1.bf16.msra.mxu0 %v435
    %515 = vmatprep.subr.bf16.mxu0 0
    %516 = vmatpush2.bf16.msra.mxu0 %v450
    %517 = vmatprep.subr.bf16.mxu0 0
    %518 = vmatpush2.bf16.msra.mxu0 %v449
    %519 = vmatprep.subr.bf16.mxu0 0
    %520 = vmatpush2.bf16.msra.mxu0 %v448
    %521 = vmatprep.subr.bf16.mxu0 0
    %522 = vmatpush2.bf16.msra.mxu0 %v447
    %523 = vmatprep.subr.bf16.mxu0 0
    %524 = vmatpush2.bf16.msra.mxu0 %v446
    %525 = vmatprep.subr.bf16.mxu0 0
    %526 = vmatpush2.bf16.msra.mxu0 %v445
    %527 = vmatprep.subr.bf16.mxu0 0
    %528 = vmatpush2.bf16.msra.mxu0 %v444
    %529 = vmatprep.subr.bf16.mxu0 0
    %530 = vmatpush2.bf16.msra.mxu0 %v443
    %531 = vmatprep.mubr.bf16.mxu0 %v233
    %532 = vmatmul.mubr.bf16.gmra.mxu0 %v232
    %v533 = vpop.f32.mrf.mxu0
    %v534 = vadd.f32 %v305, %v533
    %v535 = vpop.f32.mrf.mxu0
    %v536 = vpop.f32.mrf.mxu0
    %v537 = vpop.f32.mrf.mxu0
    %538 = vdwg.mxu0
    %539 = vmatprep.subr.bf16.mxu0 0
    %540 = vmatpush1.bf16.msra.mxu0 %v458
    %541 = vmatprep.subr.bf16.mxu0 0
    %542 = vmatpush1.bf16.msra.mxu0 %v457
    %543 = vmatprep.subr.bf16.mxu0 0
    %544 = vmatpush1.bf16.msra.mxu0 %v456
    %545 = vmatprep.subr.bf16.mxu0 0
    %546 = vmatpush1.bf16.msra.mxu0 %v455
    %547 = vmatprep.subr.bf16.mxu0 0
    %548 = vmatpush1.bf16.msra.mxu0 %v454
    %549 = vmatprep.subr.bf16.mxu0 0
    %550 = vmatpush1.bf16.msra.mxu0 %v453
    %551 = vmatprep.subr.bf16.mxu0 0
    %552 = vmatpush1.bf16.msra.mxu0 %v452
    %553 = vmatprep.subr.bf16.mxu0 0
    %554 = vmatpush1.bf16.msra.mxu0 %v451
    %555 = vmatprep.subr.bf16.mxu0 0
    %556 = vmatpush2.bf16.msra.mxu0 %v466
    %557 = vmatprep.subr.bf16.mxu0 0
    %558 = vmatpush2.bf16.msra.mxu0 %v465
    %559 = vmatprep.subr.bf16.mxu0 0
    %560 = vmatpush2.bf16.msra.mxu0 %v464
    %561 = vmatprep.subr.bf16.mxu0 0
    %562 = vmatpush2.bf16.msra.mxu0 %v463
    %563 = vmatprep.subr.bf16.mxu0 0
    %564 = vmatpush2.bf16.msra.mxu0 %v462
    %565 = vmatprep.subr.bf16.mxu0 0
    %566 = vmatpush2.bf16.msra.mxu0 %v461
    %567 = vmatprep.subr.bf16.mxu0 0
    %568 = vmatpush2.bf16.msra.mxu0 %v460
    %569 = vmatprep.subr.bf16.mxu0 0
    %570 = vmatpush2.bf16.msra.mxu0 %v459
    %571 = vmatprep.mubr.bf16.mxu0 %v235
    %572 = vmatmul.mubr.bf16.gmra.mxu0 %v234
    %v573 = vpop.f32.mrf.mxu0
    %v574 = vadd.f32 %v534, %v573
    %v575 = vpop.f32.mrf.mxu0
    %v576 = vpop.f32.mrf.mxu0
    %v577 = vpop.f32.mrf.mxu0
    %578 = vdwg.mxu0
    %v579 = vmax.f32 %v574, 0.0
    %v580 = vpack.c.bf16 %v579, %v579
    %v581 = vld [vmem:[%s5] sm:$0xf]
    %v582 = vld [vmem:[%s5 + $0x4] sm:$0xf]
    %v583 = vld [vmem:[%s5 + $0x8] sm:$0xf]
    %v584 = vld [vmem:[%s5 + $0xc] sm:$0xf]
    %v585 = vld [vmem:[%s5 + $0x10] sm:$0xf]
    %v586 = vld [vmem:[%s5 + $0x14] sm:$0xf]
    %v587 = vld [vmem:[%s5 + $0x18] sm:$0xf]
    %v588 = vld [vmem:[%s5 + $0x1c] sm:$0xf]
    %v589 = vld [vmem:[%s5 + $0x20] sm:$0xf]
    %v590 = vld [vmem:[%s5 + $0x24] sm:$0xf]
    %v591 = vld [vmem:[%s5 + $0x28] sm:$0xf]
    %v592 = vld [vmem:[%s5 + $0x2c] sm:$0xf]
    %v593 = vld [vmem:[%s5 + $0x30] sm:$0xf]
    %v594 = vld [vmem:[%s5 + $0x34] sm:$0xf]
    %v595 = vld [vmem:[%s5 + $0x38] sm:$0xf]
    %v596 = vld [vmem:[%s5 + $0x3c] sm:$0xf]
    %v597 = vld [vmem:[%s6] sm:$0x1]
    %v599 = vlaneseq
    %v600 = vshrl.u32 %v599, 7
    %v601 = vsub.s32 0, %v600
    %v602 = vrot.slane %v597, %v601
    %v620 = vunpack.c.l.b16 %v581
    %v621 = vunpack.c.l.b16 %v582
    %v622 = vunpack.c.l.b16 %v583
    %v623 = vunpack.c.l.b16 %v584
    %v624 = vunpack.c.l.b16 %v585
    %v625 = vunpack.c.l.b16 %v586
    %v626 = vunpack.c.l.b16 %v587
    %v627 = vunpack.c.l.b16 %v588
    %v628 = vunpack.c.l.b16 %v589
    %v629 = vunpack.c.l.b16 %v590
    %v630 = vunpack.c.l.b16 %v591
    %v631 = vunpack.c.l.b16 %v592
    %v632 = vunpack.c.l.b16 %v593
    %v633 = vunpack.c.l.b16 %v594
    %v634 = vunpack.c.l.b16 %v595
    %v635 = vunpack.c.l.b16 %v596
    %v636 = vpack.c.b16 %v621, %v620
    %v637 = vpack.c.b16 %v623, %v622
    %v638 = vpack.c.b16 %v625, %v624
    %v639 = vpack.c.b16 %v627, %v626
    %v640 = vpack.c.b16 %v629, %v628
    %v641 = vpack.c.b16 %v631, %v630
    %v642 = vpack.c.b16 %v633, %v632
    %v643 = vpack.c.b16 %v635, %v634
    %652 = vmatprep.subr.bf16.mxu0 0
    %653 = vmatpush1.bf16.msra.mxu0 %v643
    %654 = vmatprep.subr.bf16.mxu0 0
    %655 = vmatpush1.bf16.msra.mxu0 %v642
    %656 = vmatprep.subr.bf16.mxu0 0
    %657 = vmatpush1.bf16.msra.mxu0 %v641
    %658 = vmatprep.subr.bf16.mxu0 0
    %659 = vmatpush1.bf16.msra.mxu0 %v640
    %660 = vmatprep.subr.bf16.mxu0 0
    %661 = vmatpush1.bf16.msra.mxu0 %v639
    %662 = vmatprep.subr.bf16.mxu0 0
    %663 = vmatpush1.bf16.msra.mxu0 %v638
    %664 = vmatprep.subr.bf16.mxu0 0
    %665 = vmatpush1.bf16.msra.mxu0 %v637
    %666 = vmatprep.subr.bf16.mxu0 0
    %667 = vmatpush1.bf16.msra.mxu0 %v636
    %668 = vmatprep.subr.bf16.mxu0 0
    %669 = vmatpush2.bf16.msra.mxu0 0
    %670 = vmatprep.subr.bf16.mxu0 0
    %671 = vmatpush2.bf16.msra.mxu0 0
    %672 = vmatprep.subr.bf16.mxu0 0
    %673 = vmatpush2.bf16.msra.mxu0 0
    %674 = vmatprep.subr.bf16.mxu0 0
    %675 = vmatpush2.bf16.msra.mxu0 0
    %676 = vmatprep.subr.bf16.mxu0 0
    %677 = vmatpush2.bf16.msra.mxu0 0
    %678 = vmatprep.subr.bf16.mxu0 0
    %679 = vmatpush2.bf16.msra.mxu0 0
    %680 = vmatprep.subr.bf16.mxu0 0
    %681 = vmatpush2.bf16.msra.mxu0 0
    %682 = vmatprep.subr.bf16.mxu0 0
    %683 = vmatpush2.bf16.msra.mxu0 0
    %684 = vmatprep.mubr.bf16.mxu0 0
    %685 = vmatmul.mubr.bf16.gmra.mxu0 %v580
    %v686 = vpop.f32.mrf.mxu0
    %v687 = vadd.f32 %v602, %v686
    %v688 = vpop.f32.mrf.mxu0
    %v689 = vpop.f32.mrf.mxu0
    %v690 = vpop.f32.mrf.mxu0
    %691 = vdwg.mxu0
    %v692 = vmax.f32 %v687, 0.0
    %v693 = vpack.c.bf16 %v692, %v692
    %v694 = vld [vmem:[%s7] sm:$0xf]
    %v695 = vld [vmem:[%s7 + $0x4] sm:$0xf]
    %v696 = vld [vmem:[%s7 + $0x8] sm:$0xf]
    %v697 = vld [vmem:[%s7 + $0xc] sm:$0xf]
    %v698 = vld [vmem:[%s7 + $0x10] sm:$0xf]
    %v699 = vld [vmem:[%s7 + $0x14] sm:$0xf]
    %v700 = vld [vmem:[%s7 + $0x18] sm:$0xf]
    %v701 = vld [vmem:[%s7 + $0x1c] sm:$0xf]
    %v702 = vld [vmem:[%s8] sm:$0x1]
    %v704 = vlaneseq
    %v705 = vshrl.u32 %v704, 7
    %v706 = vsub.s32 0, %v705
    %v707 = vrot.slane %v702, %v706
    %v717 = vunpack.c.l.b16 %v694
    %v718 = vunpack.c.l.b16 %v695
    %v719 = vunpack.c.l.b16 %v696
    %v720 = vunpack.c.l.b16 %v697
    %v721 = vunpack.c.l.b16 %v698
    %v722 = vunpack.c.l.b16 %v699
    %v723 = vunpack.c.l.b16 %v700
    %v724 = vunpack.c.l.b16 %v701
    %v725 = vpack.c.b16 %v718, %v717
    %v726 = vpack.c.b16 %v720, %v719
    %v727 = vpack.c.b16 %v722, %v721
    %v728 = vpack.c.b16 %v724, %v723
    %vm733 = vcmask 523264
    %v735 = vsel %vm733, %v693, 0
    %737 = vmatprep.subr.bf16.mxu0 0
    %738 = vmatpush1.bf16.msra.mxu0 0
    %739 = vmatprep.subr.bf16.mxu0 0
    %740 = vmatpush1.bf16.msra.mxu0 0
    %741 = vmatprep.subr.bf16.mxu0 0
    %742 = vmatpush1.bf16.msra.mxu0 0
    %743 = vmatprep.subr.bf16.mxu0 0
    %744 = vmatpush1.bf16.msra.mxu0 0
    %745 = vmatprep.subr.bf16.mxu0 0
    %746 = vmatpush1.bf16.msra.mxu0 %v728
    %747 = vmatprep.subr.bf16.mxu0 0
    %748 = vmatpush1.bf16.msra.mxu0 %v727
    %749 = vmatprep.subr.bf16.mxu0 0
    %750 = vmatpush1.bf16.msra.mxu0 %v726
    %751 = vmatprep.subr.bf16.mxu0 0
    %752 = vmatpush1.bf16.msra.mxu0 %v725
    %753 = vmatprep.subr.bf16.mxu0 0
    %754 = vmatpush2.bf16.msra.mxu0 0
    %755 = vmatprep.subr.bf16.mxu0 0
    %756 = vmatpush2.bf16.msra.mxu0 0
    %757 = vmatprep.subr.bf16.mxu0 0
    %758 = vmatpush2.bf16.msra.mxu0 0
    %759 = vmatprep.subr.bf16.mxu0 0
    %760 = vmatpush2.bf16.msra.mxu0 0
    %761 = vmatprep.subr.bf16.mxu0 0
    %762 = vmatpush2.bf16.msra.mxu0 0
    %763 = vmatprep.subr.bf16.mxu0 0
    %764 = vmatpush2.bf16.msra.mxu0 0
    %765 = vmatprep.subr.bf16.mxu0 0
    %766 = vmatpush2.bf16.msra.mxu0 0
    %767 = vmatprep.subr.bf16.mxu0 0
    %768 = vmatpush2.bf16.msra.mxu0 0
    %769 = vmatprep.mubr.bf16.mxu0 0
    %770 = vmatmul.mubr.bf16.gmra.mxu0 %v735
    %v771 = vpop.f32.mrf.mxu0
    %v772 = vadd.f32 %v707, %v771
    %v773 = vpop.f32.mrf.mxu0
    %v774 = vpop.f32.mrf.mxu0
    %v775 = vpop.f32.mrf.mxu0
    %776 = vdwg.mxu0
    %777 = vst [vmem:[#allocation8] sm:$0xff] %v772
    // Predicated region
    $region50: #{tpu_custom_call.1} parent=1 // pred_check
      _
    $region51: #{tpu_custom_call.1} parent=1 // pred_check_branch
      %779 = sbr.rel (0) target = $region53
    $region52: #{tpu_custom_call.1} parent=1 // pred_region
      %s781 = ssub.s32 128, 128
      %782 = vsyncadd [#allocation4], %s781
      %s784 = sshll.u32 [#allocation8], 4
      %s785 = int_to_ptr.vmem [resolvable:$true] %s784
      %787 = dma.vmem_to_hbm [thread:$0]  %s785, 128, %s9, [#allocation4]
    $region53: #{tpu_custom_call.1} parent=1 // pred_fallthru
      _
    // Predicated region
    $region54: #{tpu_custom_call.1} parent=1 // pred_check
      _
    $region55: #{tpu_custom_call.1} parent=1 // pred_check_branch
      %789 = sbr.rel (0) target = $region57
    $region56: #{tpu_custom_call.1} parent=1 // pred_region
      %790 = dma.done [#allocation4], 128
    $region57: #{tpu_custom_call.1} parent=1 // pred_fallthru
      _
    %791 = vsyncpa [#allocation3], 1
    %792 = vsyncpa [#allocation6], 1
    %793 = vsyncpa [#allocation4], 1

</llo_original>
